<compile_context>
chip_gen: v7x
topology: tpu7x:2x2x1
jax: 0.10.0
libtpu: 0.0.40
codegen_flags: <defaults>
</compile_context>

<pallas_src>
import functools

import jax
import jax.numpy as jnp
from jax import lax
from jax.experimental import pallas as pl
from jax.experimental.pallas import tpu as pltpu


def _conv_bn_relu_kernel(x_ref, w_ref, b_ref, o_ref, *, shifts, hw, nblk):
    # x_ref : [nblk, cpad, seg]   per-sample input, spatial flattened on lanes
    #                             (seg = hw + lane_tail, lane_tail >= max shift)
    # w_ref : [Cout, KH*KW*cpad]  bn-folded conv weight (tap-major, chan-minor)
    # b_ref : [Cout, 1]           folded per-output-channel bias
    # o_ref : [nblk, Cout, hw]    "padded-grid" conv output; valid region is
    #                             rows h < HO, cols w < WO of the (H, W) grid
    parts = []
    for n in range(nblk):                       # static, tiny
        xn = x_ref[n]                           # [cpad, seg]
        # im2col rows, tap-major / channel-minor; 9 static in-bounds lane
        # slices, sublane-concat is fully (8,128)-tile aligned (K = 72).
        parts.append(jnp.concatenate([xn[:, s:s + hw] for s in shifts],
                                     axis=0))   # [K, hw]
    patches = jnp.concatenate(parts, axis=1) if nblk > 1 else parts[0]  # [K, nblk*hw]

    # Single MXU matmul, lane-dense output; bias + ReLU as one VPU pass.
    y = jnp.dot(w_ref[...], patches, preferred_element_type=jnp.float32)
    y = jnp.maximum(y + b_ref[...], 0.0)        # [Cout, nblk*hw]

    for n in range(nblk):
        o_ref[n] = y[:, n * hw:(n + 1) * hw].astype(o_ref.dtype)


def fold_example_model_params(w_oihw, g0, beta0, mean0, var0,
                              g1, beta1, mean1, var1, eps=1e-5):
    """Fold bn0 / bn1 (running stats) into the conv weight + per-channel bias.

    Call once outside the forward path (weights / running stats are static at
    inference).  Returns (w_mat [Cout, KH*KW*cpad], bias [Cout, 1]) in f32.
    """
    Cout, Cin, KH, KW = w_oihw.shape
    cpad = ((Cin + 7) // 8) * 8                       # channels -> full sublane tile

    s0 = g0 / jnp.sqrt(var0 + eps)                    # [Cin]
    b0 = beta0 - mean0 * s0                           # [Cin]
    s1 = g1 / jnp.sqrt(var1 + eps)                    # [Cout]
    b1 = beta1 - mean1 * s1                           # [Cout]

    w_folded = w_oihw * s0[None, :, None, None] * s1[:, None, None, None]
    # bn0 shift pushed through the conv (exact f32 elementwise + reduce):
    bias = s1 * jnp.sum(w_oihw * b0[None, :, None, None], axis=(1, 2, 3)) + b1

    # Matmul LHS [Cout, KH*KW*cpad]: tap-major, (zero-padded-)channel-minor.
    w_p = jnp.pad(w_folded, ((0, 0), (0, cpad - Cin), (0, 0), (0, 0)))
    w_mat = jnp.transpose(w_p, (0, 2, 3, 1)).reshape(Cout, KH * KW * cpad)
    return w_mat.astype(jnp.float32), bias.reshape(Cout, 1).astype(jnp.float32)


def example_model_forward(x_nchw, w_mat, bias_col, *, kh=3, kw=3,
                          samples_per_block=None):
    """x_nchw: [N, Cin, H, W] f32 -> [N, Cout, H-kh+1, W-kw+1] f32 (NCHW)."""
    N, Cin, H, W = x_nchw.shape
    Cout, K = w_mat.shape
    cpad = K // (kh * kw)
    HO, WO = H - kh + 1, W - kw + 1
    HW = H * W

    shifts = tuple(dh * W + dw for dh in range(kh) for dw in range(kw))
    max_shift = max(shifts)
    lane_tail = ((max_shift + 63) // 64) * 64          # keep every tap slice in-bounds
    seg = HW + lane_tail

    # One grid step by default (all samples lane-concatenated inside the
    # kernel).  On v7x one may set samples_per_block = ceil(N / 2) to keep
    # both TensorCores busy via the "parallel" grid axis.
    if samples_per_block is None:
        samples_per_block = N
    assert N % samples_per_block == 0
    num_blocks = N // samples_per_block

    # Input stays NCHW: free reshape + a SINGLE lax.pad (zero channel rows up
    # to the sublane tile, zero lane tail so all tap slices are in-bounds).
    # The zero channel rows are matched by zero weight columns in w_mat.
    x_flat = jnp.pad(x_nchw.reshape(N, Cin, HW),
                     ((0, 0), (0, cpad - Cin), (0, lane_tail)))  # [N, cpad, seg]

    kernel = functools.partial(_conv_bn_relu_kernel, shifts=shifts, hw=HW,
                               nblk=samples_per_block)

    out_flat = pl.pallas_call(
        kernel,
        grid=(num_blocks,),
        in_specs=[
            pl.BlockSpec((samples_per_block, cpad, seg), lambda i: (i, 0, 0)),
            pl.BlockSpec((Cout, K), lambda i: (0, 0)),
            pl.BlockSpec((Cout, 1), lambda i: (0, 0)),
        ],
        out_specs=pl.BlockSpec((samples_per_block, Cout, HW),
                               lambda i: (i, 0, 0)),
        out_shape=jax.ShapeDtypeStruct((N, Cout, HW), jnp.float32),
        compiler_params=pltpu.CompilerParams(
            dimension_semantics=("parallel",)),        # 2nd TC on v7x if split
    )(x_flat, w_mat, bias_col)

    # Valid region of the padded H x W conv grid: free reshape + one tiny slice.
    return out_flat.reshape(N, Cout, H, W)[:, :, :HO, :WO]


def _reference(x_nchw, w_oihw, g0, beta0, mean0, var0, g1, beta1, mean1, var1,
               eps=1e-5):
    s0 = (g0 / jnp.sqrt(var0 + eps)).reshape(1, -1, 1, 1)
    b0 = (beta0 - mean0 * g0 / jnp.sqrt(var0 + eps)).reshape(1, -1, 1, 1)
    s1 = (g1 / jnp.sqrt(var1 + eps)).reshape(1, -1, 1, 1)
    b1 = (beta1 - mean1 * g1 / jnp.sqrt(var1 + eps)).reshape(1, -1, 1, 1)
    x = x_nchw * s0 + b0
    y = lax.conv_general_dilated(
        x, w_oihw, window_strides=(1, 1), padding="VALID",
        dimension_numbers=("NCHW", "OIHW", "NCHW"),
        precision=lax.Precision.HIGHEST)
    y = y * s1 + b1
    return jnp.maximum(y, 0.0)


if __name__ == "__main__":
    key = jax.random.PRNGKey(0)
    (kx, kwt, kg0, kb0, km0, kv0, kg1, kb1, km1, kv1) = jax.random.split(key, 10)

    N, Cin, H, W = 2, 3, 16, 16
    Cout, KH, KW = 8, 3, 3

    x = jax.random.normal(kx, (N, Cin, H, W), jnp.float32)
    w_conv = 0.1 * jax.random.normal(kwt, (Cout, Cin, KH, KW), jnp.float32)
    gamma0 = 1.0 + 0.1 * jax.random.normal(kg0, (Cin,), jnp.float32)
    beta0 = 0.1 * jax.random.normal(kb0, (Cin,), jnp.float32)
    mean0 = 0.05 * jax.random.normal(km0, (Cin,), jnp.float32)
    var0 = jnp.abs(1.0 + 0.1 * jax.random.normal(kv0, (Cin,), jnp.float32))
    gamma1 = 1.0 + 0.1 * jax.random.normal(kg1, (Cout,), jnp.float32)
    beta1 = 0.1 * jax.random.normal(kb1, (Cout,), jnp.float32)
    mean1 = 0.05 * jax.random.normal(km1, (Cout,), jnp.float32)
    var1 = jnp.abs(1.0 + 0.1 * jax.random.normal(kv1, (Cout,), jnp.float32))

    # Fold BN into the conv weight/bias ONCE, outside the forward path.
    w_mat, bias_col = fold_example_model_params(
        w_conv, gamma0, beta0, mean0, var0, gamma1, beta1, mean1, var1)

    fwd = jax.jit(example_model_forward)
    out = fwd(x, w_mat, bias_col)
    out = jax.block_until_ready(out)

    ref = _reference(x, w_conv, gamma0, beta0, mean0, var0,
                     gamma1, beta1, mean1, var1)
    assert out.shape == (N, Cout, H - KH + 1, W - KW + 1)
    assert jnp.allclose(out, ref, atol=1e-4, rtol=1e-4)
    print("KERNEL_OK")
</pallas_src>

<mosaic_0001>
module attributes {stable_mosaic.version = 11 : i64} {
  func.func @_conv_bn_relu_kernel(%arg0: i32, %arg1: memref<2x8x320xf32, #tpu.memory_space<vmem>>, %arg2: memref<8x72xf32, #tpu.memory_space<vmem>>, %arg3: memref<8x1xf32, #tpu.memory_space<vmem>>, %arg4: memref<2x8x256xf32, #tpu.memory_space<vmem>>) attributes {dimension_semantics = [#tpu.dimension_semantics<parallel>], iteration_bounds = array<i64: 1>, scalar_prefetch = 0 : i64, scratch_operands = 0 : i64, tpu.core_type = #tpu.core_type<tc>, window_params = [{transform_indices = @transform_0, window_bounds = array<i64: 2, 8, 320>}, {pipeline_mode = #tpu.pipeline_mode<synchronous>, transform_indices = @transform_1, window_bounds = array<i64: 8, 72>}, {pipeline_mode = #tpu.pipeline_mode<synchronous>, transform_indices = @transform_2, window_bounds = array<i64: 8, 1>}, {transform_indices = @transform_3, window_bounds = array<i64: 2, 8, 256>}]} {
    %c0 = arith.constant 0 : index
    %c0_0 = arith.constant 0 : index
    %c0_1 = arith.constant 0 : index
    %0 = vector.load %arg1[%c0, %c0_0, %c0_1] : memref<2x8x320xf32, #tpu.memory_space<vmem>>, vector<1x8x320xf32>
    %1 = vector.shape_cast %0 : vector<1x8x320xf32> to vector<8x320xf32>
    %2 = vector.extract_strided_slice %1 {offsets = [0, 0], sizes = [8, 256], strides = [1, 1]} : vector<8x320xf32> to vector<8x256xf32>
    %3 = vector.extract_strided_slice %1 {offsets = [0, 1], sizes = [8, 256], strides = [1, 1]} : vector<8x320xf32> to vector<8x256xf32>
    %4 = vector.extract_strided_slice %1 {offsets = [0, 2], sizes = [8, 256], strides = [1, 1]} : vector<8x320xf32> to vector<8x256xf32>
    %5 = vector.extract_strided_slice %1 {offsets = [0, 16], sizes = [8, 256], strides = [1, 1]} : vector<8x320xf32> to vector<8x256xf32>
    %6 = vector.extract_strided_slice %1 {offsets = [0, 17], sizes = [8, 256], strides = [1, 1]} : vector<8x320xf32> to vector<8x256xf32>
    %7 = vector.extract_strided_slice %1 {offsets = [0, 18], sizes = [8, 256], strides = [1, 1]} : vector<8x320xf32> to vector<8x256xf32>
    %8 = vector.extract_strided_slice %1 {offsets = [0, 32], sizes = [8, 256], strides = [1, 1]} : vector<8x320xf32> to vector<8x256xf32>
    %9 = vector.extract_strided_slice %1 {offsets = [0, 33], sizes = [8, 256], strides = [1, 1]} : vector<8x320xf32> to vector<8x256xf32>
    %10 = vector.extract_strided_slice %1 {offsets = [0, 34], sizes = [8, 256], strides = [1, 1]} : vector<8x320xf32> to vector<8x256xf32>
    %11 = tpu.concatenate %2, %3, %4, %5, %6, %7, %8, %9, %10 in 0 : vector<8x256xf32>, vector<8x256xf32>, vector<8x256xf32>, vector<8x256xf32>, vector<8x256xf32>, vector<8x256xf32>, vector<8x256xf32>, vector<8x256xf32>, vector<8x256xf32> -> vector<72x256xf32>
    %c1 = arith.constant 1 : index
    %c0_2 = arith.constant 0 : index
    %c0_3 = arith.constant 0 : index
    %12 = vector.load %arg1[%c1, %c0_2, %c0_3] : memref<2x8x320xf32, #tpu.memory_space<vmem>>, vector<1x8x320xf32>
    %13 = vector.shape_cast %12 : vector<1x8x320xf32> to vector<8x320xf32>
    %14 = vector.extract_strided_slice %13 {offsets = [0, 0], sizes = [8, 256], strides = [1, 1]} : vector<8x320xf32> to vector<8x256xf32>
    %15 = vector.extract_strided_slice %13 {offsets = [0, 1], sizes = [8, 256], strides = [1, 1]} : vector<8x320xf32> to vector<8x256xf32>
    %16 = vector.extract_strided_slice %13 {offsets = [0, 2], sizes = [8, 256], strides = [1, 1]} : vector<8x320xf32> to vector<8x256xf32>
    %17 = vector.extract_strided_slice %13 {offsets = [0, 16], sizes = [8, 256], strides = [1, 1]} : vector<8x320xf32> to vector<8x256xf32>
    %18 = vector.extract_strided_slice %13 {offsets = [0, 17], sizes = [8, 256], strides = [1, 1]} : vector<8x320xf32> to vector<8x256xf32>
    %19 = vector.extract_strided_slice %13 {offsets = [0, 18], sizes = [8, 256], strides = [1, 1]} : vector<8x320xf32> to vector<8x256xf32>
    %20 = vector.extract_strided_slice %13 {offsets = [0, 32], sizes = [8, 256], strides = [1, 1]} : vector<8x320xf32> to vector<8x256xf32>
    %21 = vector.extract_strided_slice %13 {offsets = [0, 33], sizes = [8, 256], strides = [1, 1]} : vector<8x320xf32> to vector<8x256xf32>
    %22 = vector.extract_strided_slice %13 {offsets = [0, 34], sizes = [8, 256], strides = [1, 1]} : vector<8x320xf32> to vector<8x256xf32>
    %23 = tpu.concatenate %14, %15, %16, %17, %18, %19, %20, %21, %22 in 0 : vector<8x256xf32>, vector<8x256xf32>, vector<8x256xf32>, vector<8x256xf32>, vector<8x256xf32>, vector<8x256xf32>, vector<8x256xf32>, vector<8x256xf32>, vector<8x256xf32> -> vector<72x256xf32>
    %24 = tpu.concatenate %11, %23 in 1 : vector<72x256xf32>, vector<72x256xf32> -> vector<72x512xf32>
    %c0_4 = arith.constant 0 : index
    %c0_5 = arith.constant 0 : index
    %25 = vector.load %arg2[%c0_4, %c0_5] : memref<8x72xf32, #tpu.memory_space<vmem>>, vector<8x72xf32>
    %cst = arith.constant dense<0.000000e+00> : vector<8x512xf32>
    %26 = tpu.matmul %25, %24, %cst {dimension_numbers = #tpu.dot_dimension_numbers<[1], [0], [0], [1], [0, 0, 1, 1], [], []>} : vector<8x72xf32>, vector<72x512xf32>, vector<8x512xf32> -> vector<8x512xf32>
    %c0_6 = arith.constant 0 : index
    %c0_7 = arith.constant 0 : index
    %27 = vector.load %arg3[%c0_6, %c0_7] : memref<8x1xf32, #tpu.memory_space<vmem>>, vector<8x1xf32>
    %28 = vector.broadcast %27 : vector<8x1xf32> to vector<8x512xf32>
    %29 = arith.addf %26, %28 : vector<8x512xf32>
    %cst_8 = arith.constant 0.000000e+00 : f32
    %30 = vector.broadcast %cst_8 : f32 to vector<8x512xf32>
    %31 = arith.maximumf %29, %30 : vector<8x512xf32>
    %32 = vector.extract_strided_slice %31 {offsets = [0, 0], sizes = [8, 256], strides = [1, 1]} : vector<8x512xf32> to vector<8x256xf32>
    %c0_9 = arith.constant 0 : index
    %c0_10 = arith.constant 0 : index
    %c0_11 = arith.constant 0 : index
    %33 = vector.load %arg4[%c0_9, %c0_10, %c0_11] : memref<2x8x256xf32, #tpu.memory_space<vmem>>, vector<1x8x256xf32>
    %34 = vector.shape_cast %33 : vector<1x8x256xf32> to vector<8x256xf32>
    %35 = vector.shape_cast %32 : vector<8x256xf32> to vector<1x8x256xf32>
    tpu.vector_store %arg4[%c0_9, %c0_10, %c0_11], %35 {strides = array<i32>} : memref<2x8x256xf32, #tpu.memory_space<vmem>>, vector<1x8x256xf32>,
    %36 = vector.extract_strided_slice %31 {offsets = [0, 256], sizes = [8, 256], strides = [1, 1]} : vector<8x512xf32> to vector<8x256xf32>
    %c1_12 = arith.constant 1 : index
    %c0_13 = arith.constant 0 : index
    %c0_14 = arith.constant 0 : index
    %37 = vector.load %arg4[%c1_12, %c0_13, %c0_14] : memref<2x8x256xf32, #tpu.memory_space<vmem>>, vector<1x8x256xf32>
    %38 = vector.shape_cast %37 : vector<1x8x256xf32> to vector<8x256xf32>
    %39 = vector.shape_cast %36 : vector<8x256xf32> to vector<1x8x256xf32>
    tpu.vector_store %arg4[%c1_12, %c0_13, %c0_14], %39 {strides = array<i32>} : memref<2x8x256xf32, #tpu.memory_space<vmem>>, vector<1x8x256xf32>,
    return
  }
  func.func @transform_0(%arg0: i32) -> (i32, i32, i32) {
    %c0_i32 = arith.constant 0 : i32
    %c0_i32_0 = arith.constant 0 : i32
    %c0_i32_1 = arith.constant 0 : i32
    return %arg0, %c0_i32, %c0_i32_0 : i32, i32, i32
  }
  func.func @transform_1(%arg0: i32) -> (i32, i32) {
    %c0_i32 = arith.constant 0 : i32
    %c0_i32_0 = arith.constant 0 : i32
    %c0_i32_1 = arith.constant 0 : i32
    return %c0_i32, %c0_i32_0 : i32, i32
  }
  func.func @transform_2(%arg0: i32) -> (i32, i32) {
    %c0_i32 = arith.constant 0 : i32
    %c0_i32_0 = arith.constant 0 : i32
    %c0_i32_1 = arith.constant 0 : i32
    return %c0_i32, %c0_i32_0 : i32, i32
  }
  func.func @transform_3(%arg0: i32) -> (i32, i32, i32) {
    %c0_i32 = arith.constant 0 : i32
    %c0_i32_0 = arith.constant 0 : i32
    %c0_i32_1 = arith.constant 0 : i32
    return %arg0, %c0_i32, %c0_i32_0 : i32, i32, i32
  }
}

</mosaic_0001>

<llo_original>
// kernel: example_model_forward.1
$region0: #{example_model_forward.1}
  #allocation0 [shape = 'u32[]', space=smem, size = 0x4, offset = 0x4, fixed_abs, tag = 'smem constant byte address 0x4 - core index']
  #allocation1 [shape = 'u32[144,128]{1,0:T(1,128)}', space=vmem, size = 0x12000, scoped, tag = 'internal scratch']
  %s0 = inlined_call_operand.vmem [shape: f32[2,8,320], index: 0, kind: input, shape index: {}]
  %s1 = inlined_call_operand.vmem [shape: f32[8,72], index: 1, kind: input, shape index: {}]
  %s2 = inlined_call_operand.vmem [shape: f32[8,1], index: 2, kind: input, shape index: {}]
  %s3 = inlined_call_operand.vmem [shape: f32[2,8,256], index: 3, kind: output, shape index: {}]
  %s4 = sld [smem:[#allocation0]]
  $region22: #{example_model_forward.1} parent=0
    _
  %s6 = ssub.s32 1, %s4
  %s7 = scalar_select 0, %s6, %s4
  // Predicated region
  $region2: #{example_model_forward.1} parent=0 // pred_check
    _
  $region3: #{example_model_forward.1} parent=0 // pred_check_branch
    %9 = sbr.rel (0) target = $region5
  $region4: #{example_model_forward.1} parent=0 // pred_region
    _
  $region5: #{example_model_forward.1} parent=0 // pred_fallthru
    _
  // Predicated region
  $region6: #{example_model_forward.1} parent=0 // pred_check
    _
  $region7: #{example_model_forward.1} parent=0 // pred_check_branch
    %11 = sbr.rel (0) target = $region9
  $region8: #{example_model_forward.1} parent=0 // pred_region
    _
  $region9: #{example_model_forward.1} parent=0 // pred_fallthru
    _
  // Predicated region
  $region10: #{example_model_forward.1} parent=0 // pred_check
    _
  $region11: #{example_model_forward.1} parent=0 // pred_check_branch
    %13 = sbr.rel (0) target = $region13
  $region12: #{example_model_forward.1} parent=0 // pred_region
    _
  $region13: #{example_model_forward.1} parent=0 // pred_fallthru
    _
  %v14 = vld [vmem:[%s0] sm:$0xff]
  %v15 = vld [vmem:[%s0 + $0x8] sm:$0xff]
  %v16 = vld [vmem:[%s0 + $0x10] sm:$0xff]
  %20 = vrot.lane.b32.xlu0 %v14, 127
  %v21 = vpop.permute.xlu0 %20
  %22 = vrot.lane.b32.xlu0 %v15, 127
  %v23 = vpop.permute.xlu0 %22
  %24 = vrot.lane.b32.xlu0 %v16, 127
  %v25 = vpop.permute.xlu0 %24
  %vm26 = vcmask 1039360
  %v27 = vsel %vm26, %v21, %v23
  %v28 = vsel %vm26, %v23, %v25
  %31 = vrot.lane.b32.xlu0 %v14, 126
  %v32 = vpop.permute.xlu0 %31
  %33 = vrot.lane.b32.xlu0 %v15, 126
  %v34 = vpop.permute.xlu0 %33
  %35 = vrot.lane.b32.xlu0 %v16, 126
  %v36 = vpop.permute.xlu0 %35
  %vm37 = vcmask 1031168
  %v38 = vsel %vm37, %v32, %v34
  %v39 = vsel %vm37, %v34, %v36
  %42 = vrot.lane.b32.xlu0 %v14, 112
  %v43 = vpop.permute.xlu0 %42
  %44 = vrot.lane.b32.xlu0 %v15, 112
  %v45 = vpop.permute.xlu0 %44
  %46 = vrot.lane.b32.xlu0 %v16, 112
  %v47 = vpop.permute.xlu0 %46
  %vm48 = vcmask 916480
  %v49 = vsel %vm48, %v43, %v45
  %v50 = vsel %vm48, %v45, %v47
  %53 = vrot.lane.b32.xlu0 %v14, 111
  %v54 = vpop.permute.xlu0 %53
  %55 = vrot.lane.b32.xlu0 %v15, 111
  %v56 = vpop.permute.xlu0 %55
  %57 = vrot.lane.b32.xlu0 %v16, 111
  %v58 = vpop.permute.xlu0 %57
  %vm59 = vcmask 908288
  %v60 = vsel %vm59, %v54, %v56
  %v61 = vsel %vm59, %v56, %v58
  %64 = vrot.lane.b32.xlu0 %v14, 110
  %v65 = vpop.permute.xlu0 %64
  %66 = vrot.lane.b32.xlu0 %v15, 110
  %v67 = vpop.permute.xlu0 %66
  %68 = vrot.lane.b32.xlu0 %v16, 110
  %v69 = vpop.permute.xlu0 %68
  %vm70 = vcmask 900096
  %v71 = vsel %vm70, %v65, %v67
  %v72 = vsel %vm70, %v67, %v69
  %75 = vrot.lane.b32.xlu0 %v14, 96
  %v76 = vpop.permute.xlu0 %75
  %77 = vrot.lane.b32.xlu0 %v15, 96
  %v78 = vpop.permute.xlu0 %77
  %79 = vrot.lane.b32.xlu0 %v16, 96
  %v80 = vpop.permute.xlu0 %79
  %vm81 = vcmask 785408
  %v82 = vsel %vm81, %v76, %v78
  %v83 = vsel %vm81, %v78, %v80
  %86 = vrot.lane.b32.xlu0 %v14, 95
  %v87 = vpop.permute.xlu0 %86
  %88 = vrot.lane.b32.xlu0 %v15, 95
  %v89 = vpop.permute.xlu0 %88
  %90 = vrot.lane.b32.xlu0 %v16, 95
  %v91 = vpop.permute.xlu0 %90
  %vm92 = vcmask 777216
  %v93 = vsel %vm92, %v87, %v89
  %v94 = vsel %vm92, %v89, %v91
  %97 = vrot.lane.b32.xlu0 %v14, 94
  %v98 = vpop.permute.xlu0 %97
  %99 = vrot.lane.b32.xlu0 %v15, 94
  %v100 = vpop.permute.xlu0 %99
  %101 = vrot.lane.b32.xlu0 %v16, 94
  %v102 = vpop.permute.xlu0 %101
  %vm103 = vcmask 769024
  %v104 = vsel %vm103, %v98, %v100
  %v105 = vsel %vm103, %v100, %v102
  %s108 = scalar_lea.vmem %s0, 24
  %v109 = vld [vmem:[%s108] sm:$0xff]
  %v110 = vld [vmem:[%s108 + $0x8] sm:$0xff]
  %v111 = vld [vmem:[%s108 + $0x10] sm:$0xff]
  %115 = vrot.lane.b32.xlu0 %v109, 127
  %v116 = vpop.permute.xlu0 %115
  %117 = vrot.lane.b32.xlu0 %v110, 127
  %v118 = vpop.permute.xlu0 %117
  %119 = vrot.lane.b32.xlu0 %v111, 127
  %v120 = vpop.permute.xlu0 %119
  %v121 = vsel %vm26, %v116, %v118
  %v122 = vsel %vm26, %v118, %v120
  %125 = vrot.lane.b32.xlu0 %v109, 126
  %v126 = vpop.permute.xlu0 %125
  %127 = vrot.lane.b32.xlu0 %v110, 126
  %v128 = vpop.permute.xlu0 %127
  %129 = vrot.lane.b32.xlu0 %v111, 126
  %v130 = vpop.permute.xlu0 %129
  %v131 = vsel %vm37, %v126, %v128
  %v132 = vsel %vm37, %v128, %v130
  %135 = vrot.lane.b32.xlu0 %v109, 112
  %v136 = vpop.permute.xlu0 %135
  %137 = vrot.lane.b32.xlu0 %v110, 112
  %v138 = vpop.permute.xlu0 %137
  %139 = vrot.lane.b32.xlu0 %v111, 112
  %v140 = vpop.permute.xlu0 %139
  %v141 = vsel %vm48, %v136, %v138
  %v142 = vsel %vm48, %v138, %v140
  %145 = vrot.lane.b32.xlu0 %v109, 111
  %v146 = vpop.permute.xlu0 %145
  %147 = vrot.lane.b32.xlu0 %v110, 111
  %v148 = vpop.permute.xlu0 %147
  %149 = vrot.lane.b32.xlu0 %v111, 111
  %v150 = vpop.permute.xlu0 %149
  %v151 = vsel %vm59, %v146, %v148
  %v152 = vsel %vm59, %v148, %v150
  %155 = vrot.lane.b32.xlu0 %v109, 110
  %v156 = vpop.permute.xlu0 %155
  %157 = vrot.lane.b32.xlu0 %v110, 110
  %v158 = vpop.permute.xlu0 %157
  %159 = vrot.lane.b32.xlu0 %v111, 110
  %v160 = vpop.permute.xlu0 %159
  %v161 = vsel %vm70, %v156, %v158
  %v162 = vsel %vm70, %v158, %v160
  %165 = vrot.lane.b32.xlu0 %v109, 96
  %v166 = vpop.permute.xlu0 %165
  %167 = vrot.lane.b32.xlu0 %v110, 96
  %v168 = vpop.permute.xlu0 %167
  %169 = vrot.lane.b32.xlu0 %v111, 96
  %v170 = vpop.permute.xlu0 %169
  %v171 = vsel %vm81, %v166, %v168
  %v172 = vsel %vm81, %v168, %v170
  %175 = vrot.lane.b32.xlu0 %v109, 95
  %v176 = vpop.permute.xlu0 %175
  %177 = vrot.lane.b32.xlu0 %v110, 95
  %v178 = vpop.permute.xlu0 %177
  %179 = vrot.lane.b32.xlu0 %v111, 95
  %v180 = vpop.permute.xlu0 %179
  %v181 = vsel %vm92, %v176, %v178
  %v182 = vsel %vm92, %v178, %v180
  %185 = vrot.lane.b32.xlu0 %v109, 94
  %v186 = vpop.permute.xlu0 %185
  %187 = vrot.lane.b32.xlu0 %v110, 94
  %v188 = vpop.permute.xlu0 %187
  %189 = vrot.lane.b32.xlu0 %v111, 94
  %v190 = vpop.permute.xlu0 %189
  %v191 = vsel %vm103, %v186, %v188
  %v192 = vsel %vm103, %v188, %v190
  %v195 = vld [vmem:[%s1] sm:$0xff]
  %v196 = vld [vmem:[%s2] sm:$0xff]
  %198 = vset.pattern.permute.xlu0 0
  %199 = vperm.xlu0 %198, %v196
  %v200 = vpop.permute.xlu0 %199
  %vm202 = vcmask 588800
  %v204 = vsel %vm202, %v195, 0
  %206 = vmatprep.subr.mxu0 %v15
  %207 = vmatpush1.msra.mxu0 %v14
  %208 = vmatprep.subr.mxu0 %v28
  %209 = vmatpush1.msra.mxu0 %v27
  %210 = vmatprep.subr.mxu0 %v39
  %211 = vmatpush1.msra.mxu0 %v38
  %212 = vmatprep.subr.mxu0 %v50
  %213 = vmatpush1.msra.mxu0 %v49
  %214 = vmatprep.subr.mxu0 %v61
  %215 = vmatpush1.msra.mxu0 %v60
  %216 = vmatprep.subr.mxu0 %v72
  %217 = vmatpush1.msra.mxu0 %v71
  %218 = vmatprep.subr.mxu0 %v83
  %219 = vmatpush1.msra.mxu0 %v82
  %220 = vmatprep.subr.mxu0 %v94
  %221 = vmatpush1.msra.mxu0 %v93
  %222 = vmatprep.subr.mxu0 %v105
  %223 = vmatpush1.msra.mxu0 %v104
  %224 = vmatprep.subr.mxu0 0.0
  %225 = vmatpush1.msra.mxu0 0.0
  %226 = vmatprep.subr.mxu0 0.0
  %227 = vmatpush1.msra.mxu0 0.0
  %228 = vmatprep.subr.mxu0 0.0
  %229 = vmatpush1.msra.mxu0 0.0
  %230 = vmatprep.subr.mxu0 0.0
  %231 = vmatpush1.msra.mxu0 0.0
  %232 = vmatprep.subr.mxu0 0.0
  %233 = vmatpush1.msra.mxu0 0.0
  %234 = vmatprep.subr.mxu0 0.0
  %235 = vmatpush1.msra.mxu0 0.0
  %236 = vmatprep.subr.mxu0 0.0
  %237 = vmatpush1.msra.mxu0 0.0
  %238 = vmatprep.subr.mxu0 0.0
  %239 = vmatpush1.msra.mxu0 0.0
  %240 = vmatprep.subr.mxu0 0.0
  %241 = vmatpush1.msra.mxu0 0.0
  %242 = vmatprep.subr.mxu0 0.0
  %243 = vmatpush1.msra.mxu0 0.0
  %244 = vmatprep.subr.mxu0 0.0
  %245 = vmatpush1.msra.mxu0 0.0
  %246 = vmatprep.subr.mxu0 0.0
  %247 = vmatpush1.msra.mxu0 0.0
  %248 = vmatprep.subr.mxu0 0.0
  %249 = vmatpush1.msra.mxu0 0.0
  %250 = vmatprep.subr.mxu0 0.0
  %251 = vmatpush1.msra.mxu0 0.0
  %252 = vmatprep.subr.mxu0 0.0
  %253 = vmatpush1.msra.mxu0 0.0
  %254 = vmatprep.subr.mxu0 0.0
  %255 = vmatpush1.msra.mxu0 0.0
  %256 = vmatprep.subr.mxu0 0.0
  %257 = vmatpush1.msra.mxu0 0.0
  %258 = vmatprep.subr.mxu0 0.0
  %259 = vmatpush1.msra.mxu0 0.0
  %260 = vmatprep.subr.mxu0 0.0
  %261 = vmatpush1.msra.mxu0 0.0
  %262 = vmatprep.subr.mxu0 0.0
  %263 = vmatpush1.msra.mxu0 0.0
  %264 = vmatprep.subr.mxu0 0.0
  %265 = vmatpush1.msra.mxu0 0.0
  %266 = vmatprep.subr.mxu0 0.0
  %267 = vmatpush1.msra.mxu0 0.0
  %268 = vmatprep.subr.mxu0 0.0
  %269 = vmatpush1.msra.mxu0 0.0
  %270 = vmatprep.mubr.f32.mxu0 0.0
  %271 = vmatmul.mubr.f32.gmra.mrb[0].mxu0 %v204
  %v272 = vpop.f32.mrb[0].mxu0
  %v273 = vadd.f32 %v200, %v272
  %v274 = vpop.f32.mrb[0].mxu0
  %v275 = vadd.f32 %v200, %v274
  %276 = vdwg.mxu0
  %277 = vmatprep.subr.mxu0 %v110
  %278 = vmatpush1.msra.mxu0 %v109
  %279 = vmatprep.subr.mxu0 %v122
  %280 = vmatpush1.msra.mxu0 %v121
  %281 = vmatprep.subr.mxu0 %v132
  %282 = vmatpush1.msra.mxu0 %v131
  %283 = vmatprep.subr.mxu0 %v142
  %284 = vmatpush1.msra.mxu0 %v141
  %285 = vmatprep.subr.mxu0 %v152
  %286 = vmatpush1.msra.mxu0 %v151
  %287 = vmatprep.subr.mxu0 %v162
  %288 = vmatpush1.msra.mxu0 %v161
  %289 = vmatprep.subr.mxu0 %v172
  %290 = vmatpush1.msra.mxu0 %v171
  %291 = vmatprep.subr.mxu0 %v182
  %292 = vmatpush1.msra.mxu0 %v181
  %293 = vmatprep.subr.mxu0 %v192
  %294 = vmatpush1.msra.mxu0 %v191
  %295 = vmatprep.subr.mxu0 0.0
  %296 = vmatpush1.msra.mxu0 0.0
  %297 = vmatprep.subr.mxu0 0.0
  %298 = vmatpush1.msra.mxu0 0.0
  %299 = vmatprep.subr.mxu0 0.0
  %300 = vmatpush1.msra.mxu0 0.0
  %301 = vmatprep.subr.mxu0 0.0
  %302 = vmatpush1.msra.mxu0 0.0
  %303 = vmatprep.subr.mxu0 0.0
  %304 = vmatpush1.msra.mxu0 0.0
  %305 = vmatprep.subr.mxu0 0.0
  %306 = vmatpush1.msra.mxu0 0.0
  %307 = vmatprep.subr.mxu0 0.0
  %308 = vmatpush1.msra.mxu0 0.0
  %309 = vmatprep.subr.mxu0 0.0
  %310 = vmatpush1.msra.mxu0 0.0
  %311 = vmatprep.subr.mxu0 0.0
  %312 = vmatpush1.msra.mxu0 0.0
  %313 = vmatprep.subr.mxu0 0.0
  %314 = vmatpush1.msra.mxu0 0.0
  %315 = vmatprep.subr.mxu0 0.0
  %316 = vmatpush1.msra.mxu0 0.0
  %317 = vmatprep.subr.mxu0 0.0
  %318 = vmatpush1.msra.mxu0 0.0
  %319 = vmatprep.subr.mxu0 0.0
  %320 = vmatpush1.msra.mxu0 0.0
  %321 = vmatprep.subr.mxu0 0.0
  %322 = vmatpush1.msra.mxu0 0.0
  %323 = vmatprep.subr.mxu0 0.0
  %324 = vmatpush1.msra.mxu0 0.0
  %325 = vmatprep.subr.mxu0 0.0
  %326 = vmatpush1.msra.mxu0 0.0
  %327 = vmatprep.subr.mxu0 0.0
  %328 = vmatpush1.msra.mxu0 0.0
  %329 = vmatprep.subr.mxu0 0.0
  %330 = vmatpush1.msra.mxu0 0.0
  %331 = vmatprep.subr.mxu0 0.0
  %332 = vmatpush1.msra.mxu0 0.0
  %333 = vmatprep.subr.mxu0 0.0
  %334 = vmatpush1.msra.mxu0 0.0
  %335 = vmatprep.subr.mxu0 0.0
  %336 = vmatpush1.msra.mxu0 0.0
  %337 = vmatprep.subr.mxu0 0.0
  %338 = vmatpush1.msra.mxu0 0.0
  %339 = vmatprep.subr.mxu0 0.0
  %340 = vmatpush1.msra.mxu0 0.0
  %341 = vmatprep.mubr.f32.mxu0 0.0
  %342 = vmatmul.mubr.f32.gmra.mrb[0].mxu0 %v204
  %v343 = vpop.f32.mrb[0].mxu0
  %v344 = vadd.f32 %v200, %v343
  %v345 = vpop.f32.mrb[0].mxu0
  %v346 = vadd.f32 %v200, %v345
  %347 = vdwg.mxu0
  %v348 = vmax.f32 %v273, 0.0
  %v349 = vmax.f32 %v275, 0.0
  %v350 = vmax.f32 %v344, 0.0
  %v351 = vmax.f32 %v346, 0.0
  %352 = vst [vmem:[%s3] sm:$0xff] %v348
  %353 = vst [vmem:[%s3 + $0x8] sm:$0xff] %v349
  %s354 = scalar_lea.vmem %s3, 16
  %355 = vst [vmem:[%s354] sm:$0xff] %v350
  %356 = vst [vmem:[%s354 + $0x8] sm:$0xff] %v351
  // Predicated region
  $region14: #{example_model_forward.1} parent=0 // pred_check
    _
  $region15: #{example_model_forward.1} parent=0 // pred_check_branch
    %358 = sbr.rel (0) target = $region17
  $region16: #{example_model_forward.1} parent=0 // pred_region
    _
  $region17: #{example_model_forward.1} parent=0 // pred_fallthru
    _
  // Predicated region
  $region18: #{example_model_forward.1} parent=0 // pred_check
    _
  $region19: #{example_model_forward.1} parent=0 // pred_check_branch
    %360 = sbr.rel (0) target = $region21
  $region20: #{example_model_forward.1} parent=0 // pred_region
    _
  $region21: #{example_model_forward.1} parent=0 // pred_fallthru
    _

</llo_original>
